<compile_context>
chip_gen: v5e
topology: v5e:2x2
jax: 0.10.0
libtpu: 0.0.40
codegen_flags: <defaults>
</compile_context>

<pallas_src>
import functools

import jax
import jax.numpy as jnp
from jax import lax
from jax.experimental import pallas as pl
from jax.experimental.pallas import tpu as pltpu


def _vmem_limit_bytes():
    # Per-generation VMEM budget: ~3/4 of physical, capped.
    # ~48 MiB on v7x (64 MiB physical), ~96 MiB on v5e/v6e (128 MiB physical).
    cap = 64 * 1024 * 1024
    try:
        info = pltpu.get_tpu_info()
        cap = getattr(info, "vmem_capacity_bytes", cap) or cap
    except Exception:
        pass
    return int(min((cap * 3) // 4, 100 * 1024 * 1024))


# ---------------------------------------------------------------------------
# Fast path kernel: stride == 1, output spatial size == input spatial size.
# ---------------------------------------------------------------------------
def _dwsep_same_kernel(x_ref, wmask_ref, pw_ref, o_ref, *, width, ksize, pad):
    # x_ref    : (1, C, H*W)     one batch element, flattened NCHW
    # wmask_ref: (K*K, C, H*W)   per-tap depthwise weight * halo mask (folded)
    # pw_ref   : (O, C)          pointwise 1x1 weights
    # o_ref    : (1, O, H*W)     flattened NCHW output (lane-dense last dim)
    hw = x_ref.shape[-1]
    x = x_ref[0].astype(jnp.float32)                    # (C, HW)
    # Hoisted once: all tap weights (boundary masks already folded in).
    wm = wmask_ref[...].astype(jnp.float32)             # (K*K, C, HW)
    # TODO(synk): on v6e/v7x cast x/wm to bf16 (keep f32 accumulation) for 2x
    # VPU/MXU throughput; keep f32 on v5e (no bf16 VALU) and re-check tolerance.

    # Depthwise accumulation: each tap = lane roll (XLU) + one multiply-add
    # (VALU). No compares, selects, or div/mod in the hot loop.
    acc = jnp.zeros(x.shape, jnp.float32)
    for kh in range(ksize):
        for kw in range(ksize):
            off = (kh - pad) * width + (kw - pad)
            shifted = x if off == 0 else pltpu.roll(x, (-off) % hw, axis=1)
            acc = acc + shifted * wm[kh * ksize + kw]

    # Pointwise 1x1 conv: (O, C) @ (C, H*W) on the MXU, lane-dense store.
    y = jnp.dot(pw_ref[...].astype(jnp.float32), acc,
                preferred_element_type=jnp.float32)
    o_ref[0] = y.astype(o_ref.dtype)


def _dwsep_same(x_nchw, dw_weight, pw_weight, k, pad):
    n, c, h, w = x_nchw.shape
    o = pw_weight.shape[0]
    hw = h * w

    # Free, contiguous reshape only (no transpose / pad / extra HBM pass).
    x3 = x_nchw.reshape(n, c, hw)

    # Fold the halo (zero-padding) masks into the per-tap depthwise weights so
    # the kernel's tap loop is a single roll + multiply-add per tap.
    # taps[kh*K+kw, c] = dw_weight[c, 0, kh, kw]
    taps = jnp.transpose(dw_weight[:, 0], (1, 2, 0)).reshape(k * k, c)
    hh = jnp.arange(h)[:, None]
    ww = jnp.arange(w)[None, :]
    masks = []
    for kh in range(k):
        for kw in range(k):
            dh, dwo = kh - pad, kw - pad
            valid = ((hh + dh >= 0) & (hh + dh < h) &
                     (ww + dwo >= 0) & (ww + dwo < w))
            masks.append(valid.reshape(hw))
    mask = jnp.stack(masks).astype(x_nchw.dtype)                       # (K*K, HW)
    wmask = taps[:, :, None].astype(x_nchw.dtype) * mask[:, None, :]   # (K*K, C, HW)

    pw_mat = pw_weight[:, :, 0, 0]                                     # (O, C)

    kernel = functools.partial(_dwsep_same_kernel, width=w, ksize=k, pad=pad)

    # TODO(synk): for large images add an H-row grid axis with a (K-1)-row halo
    # so each per-core block stays within the v7x 64 MiB VMEM budget, and for
    # W >= 128 switch to an (N*C*H, W) layout so dh offsets become sublane
    # rolls and dw offsets single-vreg lane rolls.
    out3 = pl.pallas_call(
        kernel,
        out_shape=jax.ShapeDtypeStruct((n, o, hw), x_nchw.dtype),
        grid_spec=pltpu.PrefetchScalarGridSpec(
            num_scalar_prefetch=0,
            grid=(n,),
            in_specs=[
                pl.BlockSpec((1, c, hw), lambda b: (b, 0, 0)),
                pl.BlockSpec((k * k, c, hw), lambda b: (0, 0, 0)),
                pl.BlockSpec((o, c), lambda b: (0, 0)),
            ],
            out_specs=pl.BlockSpec((1, o, hw), lambda b: (b, 0, 0)),
        ),
        compiler_params=pltpu.CompilerParams(
            dimension_semantics=("parallel",),
            vmem_limit_bytes=_vmem_limit_bytes(),
        ),
    )(x3, wmask, pw_mat)

    return out3.reshape(n, o, h, w)


# ---------------------------------------------------------------------------
# General path (stride != 1 or non-"same" padding): per-batch NCHW fallback.
# ---------------------------------------------------------------------------
def _dwsep_general_kernel(x_ref, dw_ref, pw_ref, o_ref, *, ksize, stride, ho, wo):
    # x_ref : (1, C, Hp, Wp)  padded NCHW input, one batch element
    # dw_ref: (K*K, C, 1, 1)  depthwise tap weights
    # pw_ref: (O, C)          pointwise weights
    # o_ref : (1, O, Ho*Wo)   flattened NCHW output (lane-dense last dim)
    x = x_ref[0].astype(jnp.float32)                    # (C, Hp, Wp)
    dw = dw_ref[...].astype(jnp.float32)                # (K*K, C, 1, 1)
    c = x.shape[0]

    acc = jnp.zeros((c, ho, wo), jnp.float32)
    for kh in range(ksize):
        for kw in range(ksize):
            # TODO(synk): strided slices are not views on TPU; if this path
            # becomes hot, replace the wrapper jnp.pad + K*K slice copies with
            # the roll+mask scheme plus in-kernel halo handling.
            patch = x[:, kh:kh + (ho - 1) * stride + 1:stride,
                         kw:kw + (wo - 1) * stride + 1:stride]
            acc = acc + patch * dw[kh * ksize + kw]

    y = jnp.dot(pw_ref[...].astype(jnp.float32), acc.reshape(c, ho * wo),
                preferred_element_type=jnp.float32)
    o_ref[0] = y.astype(o_ref.dtype)


def _dwsep_general(x_nchw, dw_weight, pw_weight, k, stride, padding):
    n, c, h, w = x_nchw.shape
    o = pw_weight.shape[0]
    hp, wp = h + 2 * padding, w + 2 * padding
    ho = (hp - k) // stride + 1
    wo = (wp - k) // stride + 1

    # TODO(synk): move the halo padding into the kernel (mask / halo-aware
    # index_map) to avoid this extra HBM pass over the activations.
    x_pad = jnp.pad(x_nchw, ((0, 0), (0, 0), (padding, padding), (padding, padding)))

    dw = jnp.transpose(dw_weight[:, 0], (1, 2, 0)).reshape(k * k, c)[:, :, None, None]
    pw_mat = pw_weight[:, :, 0, 0]                                     # (O, C)

    kernel = functools.partial(_dwsep_general_kernel,
                               ksize=k, stride=stride, ho=ho, wo=wo)
    out3 = pl.pallas_call(
        kernel,
        out_shape=jax.ShapeDtypeStruct((n, o, ho * wo), x_nchw.dtype),
        grid_spec=pltpu.PrefetchScalarGridSpec(
            num_scalar_prefetch=0,
            grid=(n,),
            in_specs=[
                pl.BlockSpec((1, c, hp, wp), lambda b: (b, 0, 0, 0)),
                pl.BlockSpec((k * k, c, 1, 1), lambda b: (0, 0, 0, 0)),
                pl.BlockSpec((o, c), lambda b: (0, 0)),
            ],
            out_specs=pl.BlockSpec((1, o, ho * wo), lambda b: (b, 0, 0)),
        ),
        compiler_params=pltpu.CompilerParams(
            dimension_semantics=("parallel",),
            vmem_limit_bytes=_vmem_limit_bytes(),
        ),
    )(x_pad, dw, pw_mat)
    return out3.reshape(n, o, ho, wo)


# ---------------------------------------------------------------------------
# Public wrapper (dispatch) and reference.
# ---------------------------------------------------------------------------
def depthwise_separable_conv(x_nchw, dw_weight, pw_weight, *, stride=1, padding=0):
    """x_nchw: (N,C,H,W); dw_weight: (C,1,K,K); pw_weight: (O,C,1,1); no bias."""
    _, _, h, w = x_nchw.shape
    k = dw_weight.shape[-1]
    ho = (h + 2 * padding - k) // stride + 1
    wo = (w + 2 * padding - k) // stride + 1
    if stride == 1 and ho == h and wo == w:
        return _dwsep_same(x_nchw, dw_weight, pw_weight, k, padding)
    return _dwsep_general(x_nchw, dw_weight, pw_weight, k, stride, padding)


def _reference(x_nchw, dw_weight, pw_weight, *, stride=1, padding=0):
    c = x_nchw.shape[1]
    dn = ("NCHW", "OIHW", "NCHW")
    y = lax.conv_general_dilated(
        x_nchw, dw_weight, window_strides=(stride, stride),
        padding=[(padding, padding), (padding, padding)],
        feature_group_count=c, dimension_numbers=dn)
    y = lax.conv_general_dilated(
        y, pw_weight, window_strides=(1, 1), padding=[(0, 0), (0, 0)],
        dimension_numbers=dn)
    return y


if __name__ == "__main__":
    key = jax.random.PRNGKey(0)

    # Primary config (matches the PyTorch defaults here: bias=False both convs).
    batch, in_channels, out_channels = 2, 4, 8
    height, width = 16, 16

    def run_case(k_sz, stride, padding, subkey):
        kx, kdw, kpw = jax.random.split(subkey, 3)
        x = jax.random.normal(kx, (batch, in_channels, height, width), jnp.float32)
        dw_w = 0.1 * jax.random.normal(
            kdw, (in_channels, 1, k_sz, k_sz), jnp.float32)
        pw_w = 0.1 * jax.random.normal(
            kpw, (out_channels, in_channels, 1, 1), jnp.float32)
        out = depthwise_separable_conv(x, dw_w, pw_w, stride=stride, padding=padding)
        out = jax.block_until_ready(out)
        ref = _reference(x, dw_w, pw_w, stride=stride, padding=padding)
        assert out.shape == ref.shape
        assert jnp.allclose(out, ref, atol=1e-4, rtol=1e-4)

    k1, k2 = jax.random.split(key)
    run_case(3, 1, 1, k1)   # K=3 "same" conv (primary spec config)
    run_case(5, 1, 2, k2)   # K=5 "same" conv (extra fast-path coverage)

    print("KERNEL_OK")
</pallas_src>

<mosaic_0001>
module attributes {stable_mosaic.version = 11 : i64} {
  func.func @_dwsep_same_kernel(%arg0: i32, %arg1: memref<1x4x256xf32, #tpu.memory_space<vmem>>, %arg2: memref<9x4x256xf32, #tpu.memory_space<vmem>>, %arg3: memref<8x4xf32, #tpu.memory_space<vmem>>, %arg4: memref<1x8x256xf32, #tpu.memory_space<vmem>>) attributes {dimension_semantics = [#tpu.dimension_semantics<parallel>], iteration_bounds = array<i64: 2>, scalar_prefetch = 0 : i64, scratch_operands = 0 : i64, tpu.core_type = #tpu.core_type<tc>, window_params = [{transform_indices = @transform_0, window_bounds = array<i64: 1, 4, 256>}, {pipeline_mode = #tpu.pipeline_mode<synchronous>, transform_indices = @transform_1, window_bounds = array<i64: 9, 4, 256>}, {pipeline_mode = #tpu.pipeline_mode<synchronous>, transform_indices = @transform_2, window_bounds = array<i64: 8, 4>}, {transform_indices = @transform_3, window_bounds = array<i64: 1, 8, 256>}]} {
    %c0 = arith.constant 0 : index
    %c0_0 = arith.constant 0 : index
    %c0_1 = arith.constant 0 : index
    %0 = vector.load %arg1[%c0, %c0_0, %c0_1] : memref<1x4x256xf32, #tpu.memory_space<vmem>>, vector<1x4x256xf32>
    %1 = vector.shape_cast %0 : vector<1x4x256xf32> to vector<4x256xf32>
    %c0_2 = arith.constant 0 : index
    %c0_3 = arith.constant 0 : index
    %c0_4 = arith.constant 0 : index
    %2 = vector.load %arg2[%c0_2, %c0_3, %c0_4] : memref<9x4x256xf32, #tpu.memory_space<vmem>>, vector<9x4x256xf32>
    %cst = arith.constant 0.000000e+00 : f32
    %3 = vector.broadcast %cst : f32 to vector<4x256xf32>
    %c17_i32 = arith.constant 17 : i32
    %4 = tpu.dynamic_rotate %1 by %c17_i32 dim 1 : vector<4x256xf32>, i32 -> vector<4x256xf32>
    %5 = vector.extract_strided_slice %2 {offsets = [0, 0, 0], sizes = [1, 4, 256], strides = [1, 1, 1]} : vector<9x4x256xf32> to vector<1x4x256xf32>
    %6 = vector.shape_cast %5 : vector<1x4x256xf32> to vector<4x256xf32>
    %7 = arith.mulf %4, %6 : vector<4x256xf32>
    %8 = arith.addf %3, %7 : vector<4x256xf32>
    %c16_i32 = arith.constant 16 : i32
    %9 = tpu.dynamic_rotate %1 by %c16_i32 dim 1 : vector<4x256xf32>, i32 -> vector<4x256xf32>
    %10 = vector.extract_strided_slice %2 {offsets = [1, 0, 0], sizes = [1, 4, 256], strides = [1, 1, 1]} : vector<9x4x256xf32> to vector<1x4x256xf32>
    %11 = vector.shape_cast %10 : vector<1x4x256xf32> to vector<4x256xf32>
    %12 = arith.mulf %9, %11 : vector<4x256xf32>
    %13 = arith.addf %8, %12 : vector<4x256xf32>
    %c15_i32 = arith.constant 15 : i32
    %14 = tpu.dynamic_rotate %1 by %c15_i32 dim 1 : vector<4x256xf32>, i32 -> vector<4x256xf32>
    %15 = vector.extract_strided_slice %2 {offsets = [2, 0, 0], sizes = [1, 4, 256], strides = [1, 1, 1]} : vector<9x4x256xf32> to vector<1x4x256xf32>
    %16 = vector.shape_cast %15 : vector<1x4x256xf32> to vector<4x256xf32>
    %17 = arith.mulf %14, %16 : vector<4x256xf32>
    %18 = arith.addf %13, %17 : vector<4x256xf32>
    %c1_i32 = arith.constant 1 : i32
    %19 = tpu.dynamic_rotate %1 by %c1_i32 dim 1 : vector<4x256xf32>, i32 -> vector<4x256xf32>
    %20 = vector.extract_strided_slice %2 {offsets = [3, 0, 0], sizes = [1, 4, 256], strides = [1, 1, 1]} : vector<9x4x256xf32> to vector<1x4x256xf32>
    %21 = vector.shape_cast %20 : vector<1x4x256xf32> to vector<4x256xf32>
    %22 = arith.mulf %19, %21 : vector<4x256xf32>
    %23 = arith.addf %18, %22 : vector<4x256xf32>
    %24 = vector.extract_strided_slice %2 {offsets = [4, 0, 0], sizes = [1, 4, 256], strides = [1, 1, 1]} : vector<9x4x256xf32> to vector<1x4x256xf32>
    %25 = vector.shape_cast %24 : vector<1x4x256xf32> to vector<4x256xf32>
    %26 = arith.mulf %1, %25 : vector<4x256xf32>
    %27 = arith.addf %23, %26 : vector<4x256xf32>
    %c255_i32 = arith.constant 255 : i32
    %28 = tpu.dynamic_rotate %1 by %c255_i32 dim 1 : vector<4x256xf32>, i32 -> vector<4x256xf32>
    %29 = vector.extract_strided_slice %2 {offsets = [5, 0, 0], sizes = [1, 4, 256], strides = [1, 1, 1]} : vector<9x4x256xf32> to vector<1x4x256xf32>
    %30 = vector.shape_cast %29 : vector<1x4x256xf32> to vector<4x256xf32>
    %31 = arith.mulf %28, %30 : vector<4x256xf32>
    %32 = arith.addf %27, %31 : vector<4x256xf32>
    %c241_i32 = arith.constant 241 : i32
    %33 = tpu.dynamic_rotate %1 by %c241_i32 dim 1 : vector<4x256xf32>, i32 -> vector<4x256xf32>
    %34 = vector.extract_strided_slice %2 {offsets = [6, 0, 0], sizes = [1, 4, 256], strides = [1, 1, 1]} : vector<9x4x256xf32> to vector<1x4x256xf32>
    %35 = vector.shape_cast %34 : vector<1x4x256xf32> to vector<4x256xf32>
    %36 = arith.mulf %33, %35 : vector<4x256xf32>
    %37 = arith.addf %32, %36 : vector<4x256xf32>
    %c240_i32 = arith.constant 240 : i32
    %38 = tpu.dynamic_rotate %1 by %c240_i32 dim 1 : vector<4x256xf32>, i32 -> vector<4x256xf32>
    %39 = vector.extract_strided_slice %2 {offsets = [7, 0, 0], sizes = [1, 4, 256], strides = [1, 1, 1]} : vector<9x4x256xf32> to vector<1x4x256xf32>
    %40 = vector.shape_cast %39 : vector<1x4x256xf32> to vector<4x256xf32>
    %41 = arith.mulf %38, %40 : vector<4x256xf32>
    %42 = arith.addf %37, %41 : vector<4x256xf32>
    %c239_i32 = arith.constant 239 : i32
    %43 = tpu.dynamic_rotate %1 by %c239_i32 dim 1 : vector<4x256xf32>, i32 -> vector<4x256xf32>
    %44 = vector.extract_strided_slice %2 {offsets = [8, 0, 0], sizes = [1, 4, 256], strides = [1, 1, 1]} : vector<9x4x256xf32> to vector<1x4x256xf32>
    %45 = vector.shape_cast %44 : vector<1x4x256xf32> to vector<4x256xf32>
    %46 = arith.mulf %43, %45 : vector<4x256xf32>
    %47 = arith.addf %42, %46 : vector<4x256xf32>
    %c0_5 = arith.constant 0 : index
    %c0_6 = arith.constant 0 : index
    %48 = vector.load %arg3[%c0_5, %c0_6] : memref<8x4xf32, #tpu.memory_space<vmem>>, vector<8x4xf32>
    %cst_7 = arith.constant dense<0.000000e+00> : vector<8x256xf32>
    %49 = tpu.matmul %48, %47, %cst_7 {dimension_numbers = #tpu.dot_dimension_numbers<[1], [0], [0], [1], [0, 0, 1, 1], [], []>} : vector<8x4xf32>, vector<4x256xf32>, vector<8x256xf32> -> vector<8x256xf32>
    %c0_8 = arith.constant 0 : index
    %c0_9 = arith.constant 0 : index
    %c0_10 = arith.constant 0 : index
    %50 = vector.load %arg4[%c0_8, %c0_9, %c0_10] : memref<1x8x256xf32, #tpu.memory_space<vmem>>, vector<1x8x256xf32>
    %51 = vector.shape_cast %50 : vector<1x8x256xf32> to vector<8x256xf32>
    %52 = vector.shape_cast %49 : vector<8x256xf32> to vector<1x8x256xf32>
    tpu.vector_store %arg4[%c0_8, %c0_9, %c0_10], %52 {strides = array<i32>} : memref<1x8x256xf32, #tpu.memory_space<vmem>>, vector<1x8x256xf32>,
    return
  }
  func.func @transform_0(%arg0: i32) -> (i32, i32, i32) {
    %c0_i32 = arith.constant 0 : i32
    %c0_i32_0 = arith.constant 0 : i32
    %c0_i32_1 = arith.constant 0 : i32
    return %arg0, %c0_i32, %c0_i32_0 : i32, i32, i32
  }
  func.func @transform_1(%arg0: i32) -> (i32, i32, i32) {
    %c0_i32 = arith.constant 0 : i32
    %c0_i32_0 = arith.constant 0 : i32
    %c0_i32_1 = arith.constant 0 : i32
    %c0_i32_2 = arith.constant 0 : i32
    return %c0_i32, %c0_i32_0, %c0_i32_1 : i32, i32, i32
  }
  func.func @transform_2(%arg0: i32) -> (i32, i32) {
    %c0_i32 = arith.constant 0 : i32
    %c0_i32_0 = arith.constant 0 : i32
    %c0_i32_1 = arith.constant 0 : i32
    return %c0_i32, %c0_i32_0 : i32, i32
  }
  func.func @transform_3(%arg0: i32) -> (i32, i32, i32) {
    %c0_i32 = arith.constant 0 : i32
    %c0_i32_0 = arith.constant 0 : i32
    %c0_i32_1 = arith.constant 0 : i32
    return %arg0, %c0_i32, %c0_i32_0 : i32, i32, i32
  }
}

</mosaic_0001>

<llo_original>
// kernel: tpu_custom_call.1
$region0: #{tpu_custom_call.1}
  #allocation0 [shape = 'u32[]', space=smem, size = 0x4, offset = 0x4, fixed_abs, tag = 'smem constant byte address 0x4 - core index']
  #allocation1 [shape = 'u32[72,128]{1,0:T(1,128)}', space=vmem, size = 0x9000, scoped, tag = 'internal scratch']
  %s0 = inlined_call_operand.hbm [shape: f32[2,4,256], index: 0, kind: input, shape index: {}]
  %s1 = inlined_call_operand.hbm [shape: f32[9,4,256], index: 1, kind: input, shape index: {}]
  %s2 = inlined_call_operand.vmem [shape: f32[8,4], index: 2, kind: input, shape index: {}]
  %s3 = inlined_call_operand.hbm [shape: f32[2,8,256], index: 3, kind: output, shape index: {}]
  %s4 = sld [smem:[#allocation0]]
  $region53: #{tpu_custom_call.1} parent=0
    _
  %s6 = ssub.s32 1, %s4
  %s7 = scalar_select 0, %s6, %s4
  $region1: #{tpu_custom_call.1} parent=0
    #allocation2 [shape = 'u8[8192]{0}', space=vmem, size = 0x2000, scoped, tag = 'input window, operand 0']
    #allocation3 [shape = 's32[2]{0}', space=sflag, size = 0x8, scoped, tag = 'scoped memory for tpu_custom_call.1']
    #allocation4 [shape = 's32[2]{0}', space=sflag, size = 0x8, scoped, tag = 'scoped memory for tpu_custom_call.1']
    #allocation5 [shape = 'u8[36864]{0}', space=vmem, size = 0x9000, scoped, tag = 'input window, operand 1, single buffered']
    #allocation6 [shape = 's32[1]{0}', space=sflag, size = 0x4, scoped, tag = 'scoped memory for tpu_custom_call.1']
    #allocation7 [shape = 'u8[16384]{0}', space=vmem, size = 0x4000, scoped, tag = 'output window, operand 0']
    %8 = vsyncpa [#allocation3], 0
    %s9 = scalar_lea.sflag [#allocation3], 1
    %10 = vsyncpa %s9, 0
    %11 = vsyncpa [#allocation6], 0
    %12 = vsyncpa [#allocation4], 0
    %s13 = scalar_lea.sflag [#allocation4], 1
    %14 = vsyncpa %s13, 0
    loop: start=0, step=1, limit=4
    $region2: #{tpu_custom_call.1} parent=1 // loop_pre_header
      _
    $region3: #{tpu_custom_call.1} parent=1 // loop_header
      %s16 = sphi 0, %s20
      %p17 = scmp.ge.s32.totalorder %s16, 4
      %s26 = sphi 0, %s28
      %s29 = sphi 0, %s26
      %s30 = sphi 0, %s29
      %s46 = sphi 0, %s30
      %s50 = sphi 0, %s50
      %s52 = sphi 0, %s50
      %s53 = sphi 0, %s52
      %s67 = sphi 0, %s53
      %s71 = sphi 0, %s71
      %s73 = sphi 0, %s71
      %s74 = sphi 0, %s73
      %s88 = sphi 0, %s74
      %s94 = sphi 0, %s96
      %s97 = sphi 0, %s94
      %s98 = sphi 0, %s97
      %s114 = sphi 0, %s98
    $region4: #{tpu_custom_call.1} parent=1 // loop_header_branch
      %19 = sbr.rel (%p17) target = $region8
    $region5: #{tpu_custom_call.1} parent=1 // loop_body
      %s21 = ssub.s32 %s16, 1
      %s22 = ssub.s32 %s16, 2
      %s23 = sadd.s32 %s16, 1
      %s24 = ssub.s32 %s16, %s23
      %p25 = scmp.eq.s32.totalorder %s24, 0
      %s27 = sadd.s32 %s26, 1
      %s28 = scalar_select %p25, %s26, %s27
      %p31 = pneg %p25
      %p32 = scmp.eq.s32.totalorder %s16, 1
      %p33 = por %p31, %p32
      %p34 = scmp.ne.s32.totalorder %s26, %s29
      %p35 = scmp.eq.s32.totalorder %s16, 0
      %p36 = por %p34, %p35
      %p37 = scmp.ne.s32.totalorder %s26, %s29
      %p38 = scmp.eq.s32.totalorder %s21, 1
      %p39 = por %p37, %p38
      %p40 = scmp.ne.s32.totalorder %s29, %s30
      %p41 = scmp.eq.s32.totalorder %s21, 0
      %p42 = por %p40, %p41
      %p43 = scmp.ne.s32.totalorder %s29, %s30
      %p44 = scmp.eq.s32.totalorder %s22, 1
      %p45 = por %p43, %p44
      %p47 = scmp.ne.s32.totalorder %s30, %s46
      %p48 = scmp.eq.s32.totalorder %s22, 0
      %p49 = por %p47, %p48
      %s51 = sadd.s32 %s50, 1
      %p54 = scmp.eq.s32.totalorder %s16, 1
      %p55 = scmp.ne.s32.totalorder %s50, %s52
      %p56 = scmp.eq.s32.totalorder %s16, 0
      %p57 = por %p55, %p56
      %p58 = scmp.ne.s32.totalorder %s50, %s52
      %p59 = scmp.eq.s32.totalorder %s21, 1
      %p60 = por %p58, %p59
      %p61 = scmp.ne.s32.totalorder %s52, %s53
      %p62 = scmp.eq.s32.totalorder %s21, 0
      %p63 = por %p61, %p62
      %p64 = scmp.ne.s32.totalorder %s52, %s53
      %p65 = scmp.eq.s32.totalorder %s22, 1
      %p66 = por %p64, %p65
      %p68 = scmp.ne.s32.totalorder %s53, %s67
      %p69 = scmp.eq.s32.totalorder %s22, 0
      %p70 = por %p68, %p69
      %s72 = sadd.s32 %s71, 1
      %p75 = scmp.eq.s32.totalorder %s16, 1
      %p76 = scmp.ne.s32.totalorder %s71, %s73
      %p77 = scmp.eq.s32.totalorder %s16, 0
      %p78 = por %p76, %p77
      %p79 = scmp.ne.s32.totalorder %s71, %s73
      %p80 = scmp.eq.s32.totalorder %s21, 1
      %p81 = por %p79, %p80
      %p82 = scmp.ne.s32.totalorder %s73, %s74
      %p83 = scmp.eq.s32.totalorder %s21, 0
      %p84 = por %p82, %p83
      %p85 = scmp.ne.s32.totalorder %s73, %s74
      %p86 = scmp.eq.s32.totalorder %s22, 1
      %p87 = por %p85, %p86
      %p89 = scmp.ne.s32.totalorder %s74, %s88
      %p90 = scmp.eq.s32.totalorder %s22, 0
      %p91 = por %p89, %p90
      %s92 = ssub.s32 %s16, %s23
      %p93 = scmp.eq.s32.totalorder %s92, 0
      %s95 = sadd.s32 %s94, 1
      %s96 = scalar_select %p93, %s94, %s95
      %p99 = pneg %p93
      %p100 = scmp.eq.s32.totalorder %s16, 1
      %p101 = por %p99, %p100
      %p102 = scmp.ne.s32.totalorder %s94, %s97
      %p103 = scmp.eq.s32.totalorder %s16, 0
      %p104 = por %p102, %p103
      %p105 = scmp.ne.s32.totalorder %s94, %s97
      %p106 = scmp.eq.s32.totalorder %s21, 1
      %p107 = por %p105, %p106
      %p108 = scmp.ne.s32.totalorder %s97, %s98
      %p109 = scmp.eq.s32.totalorder %s21, 0
      %p110 = por %p108, %p109
      %p111 = scmp.ne.s32.totalorder %s97, %s98
      %p112 = scmp.eq.s32.totalorder %s22, 1
      %p113 = por %p111, %p112
      %p115 = scmp.ne.s32.totalorder %s98, %s114
      %p116 = scmp.eq.s32.totalorder %s22, 0
      %p117 = por %p115, %p116
      %p118 = scmp.le.s32.totalorder 1, %s16
      %p119 = scmp.lt.s32.totalorder %s16, 3
      %p120 = pnand %p118, %p119
      %p121 = pneg %p120
      // Predicated region
      $region9: #{tpu_custom_call.1} parent=5 // pred_check
        _
      $region10: #{tpu_custom_call.1} parent=5 // pred_check_branch
        %123 = sbr.rel (%p120) target = $region12
      $region11: #{tpu_custom_call.1} parent=5 // pred_region
        %s124 = ssub.s32 %s16, 1
        // Predicated region
        $region13: #{tpu_custom_call.1} parent=11 // pred_check
          %p125 = pneg %p63
        $region14: #{tpu_custom_call.1} parent=11 // pred_check_branch
          %127 = sbr.rel (%p125) target = $region16
        $region15: #{tpu_custom_call.1} parent=11 // pred_region
          %129 = vsyncadd [#allocation6], 0
          %s130 = sshll.u32 %s1, 4
          %s131 = int_to_ptr.hbm [resolvable:$true] %s130
          %s132 = sshll.u32 [#allocation5], 4
          %s133 = int_to_ptr.vmem [resolvable:$true] %s132
          %138 = dma.hbm_to_vmem [thread:$0]  %s131, 1152, %s133, [#allocation6], 128, 128, 8
        $region16: #{tpu_custom_call.1} parent=11 // pred_fallthru
          _
        // Predicated region
        $region17: #{tpu_custom_call.1} parent=11 // pred_check
          %p139 = pneg %p84
        $region18: #{tpu_custom_call.1} parent=11 // pred_check_branch
          %141 = sbr.rel (%p139) target = $region20
        $region19: #{tpu_custom_call.1} parent=11 // pred_region
          _
        $region20: #{tpu_custom_call.1} parent=11 // pred_fallthru
          _
      $region12: #{tpu_custom_call.1} parent=5 // pred_fallthru
        _
      %p142 = scmp.lt.s32.totalorder %s16, 2
      // Predicated region
      $region21: #{tpu_custom_call.1} parent=5 // pred_check
        %p143 = pneg %p142
      $region22: #{tpu_custom_call.1} parent=5 // pred_check_branch
        %145 = sbr.rel (%p143) target = $region24
      $region23: #{tpu_custom_call.1} parent=5 // pred_region
        // Predicated region
        $region25: #{tpu_custom_call.1} parent=23 // pred_check
          %p146 = pneg %p36
        $region26: #{tpu_custom_call.1} parent=23 // pred_check_branch
          %148 = sbr.rel (%p146) target = $region28
        $region27: #{tpu_custom_call.1} parent=23 // pred_region
          %s149 = sand.u32 %s26, 1
          %s150 = scalar_lea.sflag [#allocation3], %s149
          %s151 = sand.u32 %s26, 1
          %s152 = smul.addr %s151, 8
          %s153 = scalar_lea.vmem [#allocation2], %s152
          %155 = vsyncadd %s150, 0
          %s156 = smul.addr %s16, 2
          %s157 = smul.addr %s156, 4
          %s158 = scalar_lea.hbm %s0, %s157
          %s160 = sshll.u32 %s158, 4
          %s161 = int_to_ptr.hbm [resolvable:$true] %s160
          %s162 = sshll.u32 %s153, 4
          %s163 = int_to_ptr.vmem [resolvable:$true] %s162
          %165 = dma.hbm_to_vmem [thread:$0]  %s161, 128, %s163, %s150
        $region28: #{tpu_custom_call.1} parent=23 // pred_fallthru
          _
      $region24: #{tpu_custom_call.1} parent=5 // pred_fallthru
        _
      %p166 = scmp.le.s32.totalorder 1, %s16
      %p167 = scmp.lt.s32.totalorder %s16, 3
      %p168 = pnand %p166, %p167
      %p169 = pneg %p168
      // Predicated region
      $region29: #{tpu_custom_call.1} parent=5 // pred_check
        _
      $region30: #{tpu_custom_call.1} parent=5 // pred_check_branch
        %171 = sbr.rel (%p168) target = $region32
      $region31: #{tpu_custom_call.1} parent=5 // pred_region
        %s172 = ssub.s32 %s16, 1
        %s173 = sand.u32 %s29, 1
        %s174 = scalar_lea.sflag [#allocation3], %s173
        %s175 = sand.u32 %s29, 1
        %s176 = smul.addr %s175, 8
        %s177 = scalar_lea.vmem [#allocation2], %s176
        // Predicated region
        $region33: #{tpu_custom_call.1} parent=31 // pred_check
          %p178 = pneg %p42
        $region34: #{tpu_custom_call.1} parent=31 // pred_check_branch
          %180 = sbr.rel (%p178) target = $region36
        $region35: #{tpu_custom_call.1} parent=31 // pred_region
          %182 = dma.done %s174, 128
        $region36: #{tpu_custom_call.1} parent=31 // pred_fallthru
          _
        // Predicated region
        $region37: #{tpu_custom_call.1} parent=31 // pred_check
          %p183 = pneg %p63
        $region38: #{tpu_custom_call.1} parent=31 // pred_check_branch
          %185 = sbr.rel (%p183) target = $region40
        $region39: #{tpu_custom_call.1} parent=31 // pred_region
          %187 = dma.done [#allocation6], 1152
        $region40: #{tpu_custom_call.1} parent=31 // pred_fallthru
          _
        %s188 = sand.u32 %s29, 1
        %s189 = scalar_lea.sflag [#allocation3], %s188
        %s190 = sand.u32 %s29, 1
        %s191 = smul.addr %s190, 8
        %s192 = scalar_lea.vmem [#allocation2], %s191
        %p193 = pneg %p42
        %p194 = pneg %p39
        %p195 = pneg %p63
        %p196 = pneg %p60
        %p197 = pneg %p84
        %p198 = pneg %p81
        %p199 = pneg %p110
        %p200 = pneg %p107
        %s201 = sand.u32 %s97, 1
        %s202 = scalar_lea.sflag [#allocation4], %s201
        %s203 = sand.u32 %s97, 1
        %s204 = smul.addr %s203, 16
        %s205 = scalar_lea.vmem [#allocation7], %s204
        %v206 = vld [vmem:[%s177] sm:$0xff]
        %v207 = vld [vmem:[#allocation5] sm:$0xff]
        %v208 = vld [vmem:[#allocation5 + $0x8] sm:$0xff]
        %v209 = vld [vmem:[#allocation5 + $0x10] sm:$0xff]
        %v210 = vld [vmem:[#allocation5 + $0x18] sm:$0xff]
        %v211 = vld [vmem:[#allocation5 + $0x20] sm:$0xff]
        %v212 = vld [vmem:[#allocation5 + $0x28] sm:$0xff]
        %v213 = vld [vmem:[#allocation5 + $0x30] sm:$0xff]
        %v214 = vld [vmem:[#allocation5 + $0x38] sm:$0xff]
        %v215 = vld [vmem:[#allocation5 + $0x40] sm:$0xff]
        %217 = vst [vmem:[#allocation1] ss:$2 sm:$0xff] %v206
        %v218 = vld.sshfl [vmem:[#allocation1] sm:$0xff pattern:$0x75316420]
        %v219 = vld.sshfl [vmem:[#allocation1 + $0x8] sm:$0xff pattern:$0x75316420]
        %222 = vrot.lane.b32.xlu0 %v218, 17
        %v223 = vpop.permute.xlu0 %222
        %224 = vrot.lane.b32.xlu0 %v219, 17
        %v225 = vpop.permute.xlu0 %224
        %v226 = vlaneseq
        %v227 = vand.u32 %v226, 127
        %vm228 = vcmp.lt.s32.totalorder %v227, 17
        %v229 = vsel %vm228, %v223, %v225
        %v230 = vsel %vm228, %v225, %v223
        %232 = vst [vmem:[#allocation1] ss:$2 sm:$0xff] %v207
        %v233 = vld.sshfl [vmem:[#allocation1] sm:$0xff pattern:$0x75316420]
        %v234 = vld.sshfl [vmem:[#allocation1 + $0x8] sm:$0xff pattern:$0x75316420]
        %v237 = vmul.f32 %v230, %v233
        %v238 = vmul.f32 %v229, %v234
        %v239 = vadd.f32 %v237, 0.0
        %v240 = vadd.f32 %v238, 0.0
        %241 = vst [vmem:[#allocation1] ss:$2 sm:$0xff] %v206
        %v242 = vld.sshfl [vmem:[#allocation1] sm:$0xff pattern:$0x75316420]
        %v243 = vld.sshfl [vmem:[#allocation1 + $0x8] sm:$0xff pattern:$0x75316420]
        %246 = vrot.lane.b32.xlu0 %v242, 16
        %v247 = vpop.permute.xlu0 %246
        %248 = vrot.lane.b32.xlu0 %v243, 16
        %v249 = vpop.permute.xlu0 %248
        %vm250 = vcmp.lt.s32.totalorder %v227, 16
        %v251 = vsel %vm250, %v247, %v249
        %v252 = vsel %vm250, %v249, %v247
        %254 = vst [vmem:[#allocation1] ss:$2 sm:$0xff] %v208
        %v255 = vld.sshfl [vmem:[#allocation1] sm:$0xff pattern:$0x75316420]
        %v256 = vld.sshfl [vmem:[#allocation1 + $0x8] sm:$0xff pattern:$0x75316420]
        %v259 = vmul.f32 %v252, %v255
        %v260 = vmul.f32 %v251, %v256
        %v261 = vadd.f32 %v239, %v259
        %v262 = vadd.f32 %v240, %v260
        %263 = vst [vmem:[#allocation1] ss:$2 sm:$0xff] %v206
        %v264 = vld.sshfl [vmem:[#allocation1] sm:$0xff pattern:$0x75316420]
        %v265 = vld.sshfl [vmem:[#allocation1 + $0x8] sm:$0xff pattern:$0x75316420]
        %268 = vrot.lane.b32.xlu0 %v264, 15
        %v269 = vpop.permute.xlu0 %268
        %270 = vrot.lane.b32.xlu0 %v265, 15
        %v271 = vpop.permute.xlu0 %270
        %vm272 = vcmp.lt.s32.totalorder %v227, 15
        %v273 = vsel %vm272, %v269, %v271
        %v274 = vsel %vm272, %v271, %v269
        %276 = vst [vmem:[#allocation1] ss:$2 sm:$0xff] %v209
        %v277 = vld.sshfl [vmem:[#allocation1] sm:$0xff pattern:$0x75316420]
        %v278 = vld.sshfl [vmem:[#allocation1 + $0x8] sm:$0xff pattern:$0x75316420]
        %v281 = vmul.f32 %v274, %v277
        %v282 = vmul.f32 %v273, %v278
        %v283 = vadd.f32 %v261, %v281
        %v284 = vadd.f32 %v262, %v282
        %285 = vst [vmem:[#allocation1] ss:$2 sm:$0xff] %v206
        %v286 = vld.sshfl [vmem:[#allocation1] sm:$0xff pattern:$0x75316420]
        %v287 = vld.sshfl [vmem:[#allocation1 + $0x8] sm:$0xff pattern:$0x75316420]
        %290 = vrot.lane.b32.xlu0 %v286, 1
        %v291 = vpop.permute.xlu0 %290
        %292 = vrot.lane.b32.xlu0 %v287, 1
        %v293 = vpop.permute.xlu0 %292
        %vm294 = vcmp.lt.s32.totalorder %v227, 1
        %v295 = vsel %vm294, %v291, %v293
        %v296 = vsel %vm294, %v293, %v291
        %298 = vst [vmem:[#allocation1] ss:$2 sm:$0xff] %v210
        %v299 = vld.sshfl [vmem:[#allocation1] sm:$0xff pattern:$0x75316420]
        %v300 = vld.sshfl [vmem:[#allocation1 + $0x8] sm:$0xff pattern:$0x75316420]
        %v303 = vmul.f32 %v296, %v299
        %v304 = vmul.f32 %v295, %v300
        %v305 = vadd.f32 %v283, %v303
        %v306 = vadd.f32 %v284, %v304
        %v307 = vmul.f32 %v206, %v211
        %309 = vst [vmem:[#allocation1] ss:$2 sm:$0xff] %v307
        %v310 = vld.sshfl [vmem:[#allocation1] sm:$0xff pattern:$0x75316420]
        %v311 = vld.sshfl [vmem:[#allocation1 + $0x8] sm:$0xff pattern:$0x75316420]
        %v314 = vadd.f32 %v305, %v310
        %v315 = vadd.f32 %v306, %v311
        %316 = vst [vmem:[#allocation1] ss:$2 sm:$0xff] %v206
        %v317 = vld.sshfl [vmem:[#allocation1] sm:$0xff pattern:$0x75316420]
        %v318 = vld.sshfl [vmem:[#allocation1 + $0x8] sm:$0xff pattern:$0x75316420]
        %321 = vrot.lane.b32.xlu0 %v317, 127
        %v322 = vpop.permute.xlu0 %321
        %323 = vrot.lane.b32.xlu0 %v318, 127
        %v324 = vpop.permute.xlu0 %323
        %vm325 = vcmp.lt.s32.totalorder %v227, 127
        %v326 = vsel %vm325, %v322, %v324
        %v327 = vsel %vm325, %v324, %v322
        %329 = vst [vmem:[#allocation1] ss:$2 sm:$0xff] %v212
        %v330 = vld.sshfl [vmem:[#allocation1] sm:$0xff pattern:$0x75316420]
        %v331 = vld.sshfl [vmem:[#allocation1 + $0x8] sm:$0xff pattern:$0x75316420]
        %v334 = vmul.f32 %v326, %v330
        %v335 = vmul.f32 %v327, %v331
        %v336 = vadd.f32 %v314, %v334
        %v337 = vadd.f32 %v315, %v335
        %338 = vst [vmem:[#allocation1] ss:$2 sm:$0xff] %v206
        %v339 = vld.sshfl [vmem:[#allocation1] sm:$0xff pattern:$0x75316420]
        %v340 = vld.sshfl [vmem:[#allocation1 + $0x8] sm:$0xff pattern:$0x75316420]
        %343 = vrot.lane.b32.xlu0 %v339, 113
        %v344 = vpop.permute.xlu0 %343
        %345 = vrot.lane.b32.xlu0 %v340, 113
        %v346 = vpop.permute.xlu0 %345
        %vm347 = vcmp.lt.s32.totalorder %v227, 113
        %v348 = vsel %vm347, %v344, %v346
        %v349 = vsel %vm347, %v346, %v344
        %351 = vst [vmem:[#allocation1] ss:$2 sm:$0xff] %v213
        %v352 = vld.sshfl [vmem:[#allocation1] sm:$0xff pattern:$0x75316420]
        %v353 = vld.sshfl [vmem:[#allocation1 + $0x8] sm:$0xff pattern:$0x75316420]
        %v356 = vmul.f32 %v348, %v352
        %v357 = vmul.f32 %v349, %v353
        %v358 = vadd.f32 %v336, %v356
        %v359 = vadd.f32 %v337, %v357
        %360 = vst [vmem:[#allocation1] ss:$2 sm:$0xff] %v206
        %v361 = vld.sshfl [vmem:[#allocation1] sm:$0xff pattern:$0x75316420]
        %v362 = vld.sshfl [vmem:[#allocation1 + $0x8] sm:$0xff pattern:$0x75316420]
        %365 = vrot.lane.b32.xlu0 %v361, 112
        %v366 = vpop.permute.xlu0 %365
        %367 = vrot.lane.b32.xlu0 %v362, 112
        %v368 = vpop.permute.xlu0 %367
        %vm369 = vcmp.lt.s32.totalorder %v227, 112
        %v370 = vsel %vm369, %v366, %v368
        %v371 = vsel %vm369, %v368, %v366
        %373 = vst [vmem:[#allocation1] ss:$2 sm:$0xff] %v214
        %v374 = vld.sshfl [vmem:[#allocation1] sm:$0xff pattern:$0x75316420]
        %v375 = vld.sshfl [vmem:[#allocation1 + $0x8] sm:$0xff pattern:$0x75316420]
        %v378 = vmul.f32 %v370, %v374
        %v379 = vmul.f32 %v371, %v375
        %v380 = vadd.f32 %v358, %v378
        %v381 = vadd.f32 %v359, %v379
        %382 = vst [vmem:[#allocation1] ss:$2 sm:$0xff] %v206
        %v383 = vld.sshfl [vmem:[#allocation1] sm:$0xff pattern:$0x75316420]
        %v384 = vld.sshfl [vmem:[#allocation1 + $0x8] sm:$0xff pattern:$0x75316420]
        %387 = vrot.lane.b32.xlu0 %v383, 111
        %v388 = vpop.permute.xlu0 %387
        %389 = vrot.lane.b32.xlu0 %v384, 111
        %v390 = vpop.permute.xlu0 %389
        %vm391 = vcmp.lt.s32.totalorder %v227, 111
        %v392 = vsel %vm391, %v388, %v390
        %v393 = vsel %vm391, %v390, %v388
        %395 = vst [vmem:[#allocation1] ss:$2 sm:$0xff] %v215
        %v396 = vld.sshfl [vmem:[#allocation1] sm:$0xff pattern:$0x75316420]
        %v397 = vld.sshfl [vmem:[#allocation1 + $0x8] sm:$0xff pattern:$0x75316420]
        %v400 = vmul.f32 %v392, %v396
        %v401 = vmul.f32 %v393, %v397
        %v402 = vadd.f32 %v380, %v400
        %v403 = vadd.f32 %v381, %v401
        %v404 = vld [vmem:[%s2] sm:$0xff]
        %vm405 = vcmask 31744
        %v407 = vsel %vm405, %v404, 0
        %vm409 = vcmask 1043456
        %v411 = vsel %vm409, %v402, 0
        %v414 = vsel %vm409, %v403, 0
        %416 = vmatpush.msra.mxu0 0.0
        %417 = vmatpush.msra.mxu0 0.0
        %418 = vmatpush.msra.mxu0 0.0
        %419 = vmatpush.msra.mxu0 0.0
        %420 = vmatpush.msra.mxu0 0.0
        %421 = vmatpush.msra.mxu0 0.0
        %422 = vmatpush.msra.mxu0 0.0
        %423 = vmatpush.msra.mxu0 0.0
        %424 = vmatpush.msra.mxu0 0.0
        %425 = vmatpush.msra.mxu0 0.0
        %426 = vmatpush.msra.mxu0 0.0
        %427 = vmatpush.msra.mxu0 0.0
        %428 = vmatpush.msra.mxu0 0.0
        %429 = vmatpush.msra.mxu0 0.0
        %430 = vmatpush.msra.mxu0 0.0
        %431 = vmatpush.msra.mxu0 %v411
        %432 = vmatmul.f32.gmra.mxu0 %v407
        %v433 = vpop.f32.mrf.mxu0
        %v434 = vadd.f32 0.0, %v433
        %435 = vdwg.mxu0
        %436 = vmatpush.msra.mxu0 0.0
        %437 = vmatpush.msra.mxu0 0.0
        %438 = vmatpush.msra.mxu0 0.0
        %439 = vmatpush.msra.mxu0 0.0
        %440 = vmatpush.msra.mxu0 0.0
        %441 = vmatpush.msra.mxu0 0.0
        %442 = vmatpush.msra.mxu0 0.0
        %443 = vmatpush.msra.mxu0 0.0
        %444 = vmatpush.msra.mxu0 0.0
        %445 = vmatpush.msra.mxu0 0.0
        %446 = vmatpush.msra.mxu0 0.0
        %447 = vmatpush.msra.mxu0 0.0
        %448 = vmatpush.msra.mxu0 0.0
        %449 = vmatpush.msra.mxu0 0.0
        %450 = vmatpush.msra.mxu0 0.0
        %451 = vmatpush.msra.mxu0 %v414
        %452 = vmatmul.f32.gmra.mxu0 %v407
        %v453 = vpop.f32.mrf.mxu0
        %v454 = vadd.f32 0.0, %v453
        %455 = vdwg.mxu0
        %456 = vst [vmem:[%s205] sm:$0xff] %v434
        %457 = vst [vmem:[%s205 + $0x8] sm:$0xff] %v454
        %s458 = sand.u32 %s97, 1
        %s459 = scalar_lea.sflag [#allocation4], %s458
        %s460 = sand.u32 %s97, 1
        %s461 = smul.addr %s460, 16
        %s462 = scalar_lea.vmem [#allocation7], %s461
        // Predicated region
        $region41: #{tpu_custom_call.1} parent=31 // pred_check
          %p463 = pneg %p107
        $region42: #{tpu_custom_call.1} parent=31 // pred_check_branch
          %465 = sbr.rel (%p463) target = $region44
        $region43: #{tpu_custom_call.1} parent=31 // pred_region
          %467 = vsyncadd %s459, 0
          %s468 = smul.addr %s21, 2
          %s469 = smul.addr %s468, 8
          %s470 = scalar_lea.hbm %s3, %s469
          %s472 = sshll.u32 %s462, 4
          %s473 = int_to_ptr.vmem [resolvable:$true] %s472
          %s474 = sshll.u32 %s470, 4
          %s475 = int_to_ptr.hbm [resolvable:$true] %s474
          %477 = dma.vmem_to_hbm [thread:$0]  %s473, 256, %s475, %s459
        $region44: #{tpu_custom_call.1} parent=31 // pred_fallthru
          _
      $region32: #{tpu_custom_call.1} parent=5 // pred_fallthru
        _
      %p478 = scmp.le.s32.totalorder 2, %s16
      // Predicated region
      $region45: #{tpu_custom_call.1} parent=5 // pred_check
        %p479 = pneg %p478
      $region46: #{tpu_custom_call.1} parent=5 // pred_check_branch
        %481 = sbr.rel (%p479) target = $region48
      $region47: #{tpu_custom_call.1} parent=5 // pred_region
        %s482 = ssub.s32 %s16, 2
        // Predicated region
        $region49: #{tpu_custom_call.1} parent=47 // pred_check
          %p483 = pneg %p113
        $region50: #{tpu_custom_call.1} parent=47 // pred_check_branch
          %485 = sbr.rel (%p483) target = $region52
        $region51: #{tpu_custom_call.1} parent=47 // pred_region
          %s486 = sand.u32 %s98, 1
          %s487 = scalar_lea.sflag [#allocation4], %s486
          %s488 = sand.u32 %s98, 1
          %s489 = smul.addr %s488, 16
          %s490 = scalar_lea.vmem [#allocation7], %s489
          %492 = dma.done %s487, 256
        $region52: #{tpu_custom_call.1} parent=47 // pred_fallthru
          _
      $region48: #{tpu_custom_call.1} parent=5 // pred_fallthru
        _
    $region6: #{tpu_custom_call.1} parent=1 // loop_footer
      %s20 = sadd.s32 1, %s16
    $region7: #{tpu_custom_call.1} parent=1 // loop_footer_branch
      %15 = sbr.rel target = $region3
    $region8: #{tpu_custom_call.1} parent=1 // loop_exit
      _
    %493 = vsyncpa [#allocation3], 1
    %s494 = scalar_lea.sflag [#allocation3], 1
    %495 = vsyncpa %s494, 1
    %496 = vsyncpa [#allocation6], 1
    %497 = vsyncpa [#allocation4], 1
    %s498 = scalar_lea.sflag [#allocation4], 1
    %499 = vsyncpa %s498, 1

</llo_original>
